<compile_context>
chip_gen: v5e
topology: v5e:2x2
jax: 0.10.0
libtpu: 0.0.40
codegen_flags: <defaults>
</compile_context>

<pallas_src>
import math
import functools

import jax
import jax.numpy as jnp
from jax.experimental import pallas as pl
from jax.experimental.pallas import tpu as pltpu

_INV_SQRT2 = 0.7071067811865476  # hoisted 1/sqrt(2)


def _gelu_exact(x):
    # nn.GELU() default: 0.5 * x * (1 + erf(x / sqrt(2))), computed in f32.
    return 0.5 * x * (1.0 + jax.lax.erf(x * _INV_SQRT2))


def gpt_mlp_kernel(x_ref, w1_ref, b1_ref, w2_ref, b2_ref, o_ref, *scratch,
                   acc_in_out):
    # Grid: (token tiles, intermediate slabs). Shapes per step:
    #   x_ref:  (tm, H)     w1_ref: (H, ti)   b1_ref: (1, ti)
    #   w2_ref: (ti, H)     b2_ref: (1, H)    o_ref:  (tm, H)
    #   acc: (tm, H) f32, either o_ref itself (f32 output) or a VMEM scratch.
    acc_ref = o_ref if acc_in_out else scratch[0]
    j = pl.program_id(1)

    @pl.when(j == 0)
    def _():
        acc_ref[...] = jnp.zeros_like(acc_ref)

    # First matmul slab on the MXU (native-dtype operands, f32 accumulation),
    # fused bias + exact GELU on the VPU.
    # TODO(synk): if a bundle dump shows the MXU idle during bias+GELU, split
    # the ti slab in two and interleave dot1(half2) with GELU(half1)/dot2.
    h = jnp.dot(x_ref[...], w1_ref[...], preferred_element_type=jnp.float32)
    h = _gelu_exact(h + b1_ref[...].astype(jnp.float32))

    # Second matmul slab, accumulated in f32.
    acc_ref[...] += jnp.dot(h.astype(w2_ref.dtype), w2_ref[...],
                            preferred_element_type=jnp.float32)

    @pl.when(j == pl.num_programs(1) - 1)
    def _():
        y = acc_ref[...] + b2_ref[...].astype(jnp.float32)
        # TODO(synk): dropout implemented as identity (eval mode); training-mode
        # dropout would use pltpu.prng_seed/prng_random_bits + mask/scale here.
        o_ref[...] = y.astype(o_ref.dtype)


def _round_up(x, m):
    return (x + m - 1) // m * m


def _device_kind():
    try:
        return jax.devices()[0].device_kind.lower()
    except Exception:
        return ""


def _vmem_capacity_bytes():
    try:
        return int(pltpu.get_tpu_info().vmem_capacity_bytes)
    except Exception:
        # Conservative fallbacks: v7x = 64 MiB / TC, v5e/v6e = 128 MiB.
        return 64 * 1024 * 1024 if "v7" in _device_kind() else 128 * 1024 * 1024


def _select_tiles(M, Hp, Ip128, op_bytes, out_bytes, vmem_cap, two_cores):
    """Pick (tm, ti) so double-buffered slabs + token tiles fit the VMEM budget."""
    budget = int(vmem_cap * 0.72)
    big_vmem = vmem_cap >= 96 * 1024 * 1024   # v5e / v6e (128 MiB)

    # Generation-aware targets: large tm amortizes weight re-streaming
    # (FLOP/weight-byte ~ tm); v7x (64 MiB, 2 TC) uses smaller tiles.
    if big_vmem:
        tm = 1024 if op_bytes <= 2 else 512
        ti_cap = Ip128                      # allow fully-resident weights
    else:
        tm = 512 if op_bytes <= 2 else 384
        ti_cap = 512 if op_bytes <= 2 else 256

    # Never exceed the token count; keep >= 2 token tiles on dual-TC parts.
    tm = min(tm, _round_up(M, 8))
    if two_cores and M > 256:
        tm = min(tm, _round_up((M + 1) // 2, 8))
    tm = max(8, _round_up(tm, 8))

    def footprint(tm_, ti_):
        acc = 0 if out_bytes == 4 else tm_ * Hp * 4    # f32 out -> acc in o_ref
        return (2 * Hp * ti_ * op_bytes      # W1 slab (double-buffered)
                + 2 * ti_ * Hp * op_bytes    # W2 slab (double-buffered)
                + 2 * tm_ * Hp * op_bytes    # x token tile
                + 2 * tm_ * Hp * out_bytes   # output tile
                + acc)

    # ti candidates: multiples of 128 that divide Ip128 (no extra I padding).
    cands = sorted((t for t in range(128, Ip128 + 1, 128) if Ip128 % t == 0),
                   reverse=True)

    def pick_ti(tm_):
        for t in cands:
            if t <= ti_cap and footprint(tm_, t) <= budget:
                return t
        return cands[-1]   # 128

    ti = pick_ti(tm)
    while footprint(tm, ti) > budget and tm > 8:
        tm = max(8, _round_up(tm // 2, 8))
        ti = pick_ti(tm)

    # TODO(synk): on v5e, consider pipeline_mode=pl.Buffered(3) on the W1/W2
    # BlockSpecs if a trace shows exposed weight DMA (plenty of spare VMEM).
    return tm, ti, footprint(tm, ti)


def _fit2d(a, rows, cols, dtype):
    """Cast + zero-pad to (rows, cols); no copy on the already-aligned path."""
    r, c = a.shape
    a = a.astype(dtype)
    if (r, c) == (rows, cols):
        return a
    return jnp.zeros((rows, cols), dtype).at[:r, :c].set(a)


@functools.partial(jax.jit, static_argnames=("tm", "ti", "vmem_limit", "mxu_name"))
def _gpt_mlp_impl(x, w1, b1, w2, b2, *, tm, ti, vmem_limit, mxu_name):
    B, S, H = x.shape
    I = w1.shape[1]
    M = B * S
    out_dtype = x.dtype
    mxu_dtype = jnp.dtype(mxu_name)

    Hp = _round_up(H, 128)
    Ip = _round_up(_round_up(I, 128), ti)
    Mp = _round_up(M, tm)

    # Padding is zeros => GELU(0)=0 and zero W2 rows keep the valid slice exact.
    x2d = _fit2d(x.reshape(M, H), Mp, Hp, mxu_dtype)
    w1p = _fit2d(w1, Hp, Ip, mxu_dtype)
    w2p = _fit2d(w2, Ip, Hp, mxu_dtype)
    b1p = _fit2d(b1.reshape(1, I), 1, Ip, b1.dtype)
    b2p = _fit2d(b2.reshape(1, H), 1, Hp, b2.dtype)

    acc_in_out = jnp.dtype(out_dtype) == jnp.dtype(jnp.float32)
    grid = (Mp // tm, Ip // ti)
    n_weight_passes = grid[0]   # weight slabs are re-streamed once per token tile

    nbytes = lambda a: a.size * a.dtype.itemsize
    cost = pl.CostEstimate(
        flops=4 * Mp * Hp * Ip,                       # two matmuls
        transcendentals=Mp * Ip,                      # erf in GELU
        bytes_accessed=(nbytes(x2d)
                        + n_weight_passes * (nbytes(w1p) + nbytes(w2p)
                                             + nbytes(b1p) + nbytes(b2p))
                        + Mp * Hp * jnp.dtype(out_dtype).itemsize),
    )

    scratch = [] if acc_in_out else [pltpu.VMEM((tm, Hp), jnp.float32)]

    out2d = pl.pallas_call(
        functools.partial(gpt_mlp_kernel, acc_in_out=acc_in_out),
        out_shape=jax.ShapeDtypeStruct((Mp, Hp), out_dtype),
        grid_spec=pltpu.PrefetchScalarGridSpec(
            num_scalar_prefetch=0,
            grid=grid,
            in_specs=[
                pl.BlockSpec((tm, Hp), lambda i, j: (i, 0)),   # token tile
                pl.BlockSpec((Hp, ti), lambda i, j: (0, j)),   # W1 slab
                pl.BlockSpec((1, ti), lambda i, j: (0, j)),    # b1 slab
                pl.BlockSpec((ti, Hp), lambda i, j: (j, 0)),   # W2 slab
                pl.BlockSpec((1, Hp), lambda i, j: (0, 0)),    # b2
            ],
            out_specs=pl.BlockSpec((tm, Hp), lambda i, j: (i, 0)),
            scratch_shapes=scratch,
        ),
        compiler_params=pltpu.CompilerParams(
            dimension_semantics=("parallel", "arbitrary"),
            vmem_limit_bytes=vmem_limit,
        ),
        cost_estimate=cost,
    )(x2d, w1p, b1p, w2p, b2p)

    return out2d[:M, :H].reshape(B, S, H)


def gpt_mlp(x, w1, b1, w2, b2, *, mxu_dtype=None):
    """GPTMLP forward. x: (B, S, H); w1: (H, I), b1: (I,), w2: (I, H), b2: (H,).

    Weights are stored pre-transposed to (in, out). `mxu_dtype` optionally casts
    x/W1/W2 for the MXU (e.g. jnp.bfloat16); accumulation and output stay f32
    when the input is f32. Tiles / VMEM limit are derived per TPU generation.
    """
    B, S, H = x.shape
    I = w1.shape[1]
    M = B * S

    mxu_name = jnp.dtype(mxu_dtype if mxu_dtype is not None else x.dtype).name
    op_bytes = jnp.dtype(mxu_name).itemsize
    out_bytes = jnp.dtype(x.dtype).itemsize

    Hp = _round_up(H, 128)
    Ip128 = _round_up(I, 128)

    vmem_cap = _vmem_capacity_bytes()
    two_cores = "v7" in _device_kind()

    tm, ti, needed = _select_tiles(M, Hp, Ip128, op_bytes, out_bytes,
                                   vmem_cap, two_cores)
    vmem_limit = int(min(vmem_cap - 4 * 1024 * 1024,
                         max(needed + 16 * 1024 * 1024, 32 * 1024 * 1024)))

    return _gpt_mlp_impl(x, w1, b1, w2, b2, tm=tm, ti=ti,
                         vmem_limit=vmem_limit, mxu_name=mxu_name)


if __name__ == "__main__":
    # Small config: hidden=32, intermediate=4*hidden=128, batch=2, seq=8.
    B, S, H = 2, 8, 32
    I = 4 * H

    key = jax.random.PRNGKey(0)
    kx, kw1, kb1, kw2, kb2 = jax.random.split(key, 5)

    x = jax.random.normal(kx, (B, S, H), dtype=jnp.float32)

    # Deterministic init mimicking nn.Linear's uniform(-1/sqrt(in), 1/sqrt(in)).
    lim1 = 1.0 / math.sqrt(H)
    lim2 = 1.0 / math.sqrt(I)
    # Stored already transposed to (in, out) for the kernel.
    w1 = jax.random.uniform(kw1, (H, I), minval=-lim1, maxval=lim1, dtype=jnp.float32)
    b1 = jax.random.uniform(kb1, (I,), minval=-lim1, maxval=lim1, dtype=jnp.float32)
    w2 = jax.random.uniform(kw2, (I, H), minval=-lim2, maxval=lim2, dtype=jnp.float32)
    b2 = jax.random.uniform(kb2, (H,), minval=-lim2, maxval=lim2, dtype=jnp.float32)

    # Pure-JAX reference (exact GELU, dropout in eval mode = identity).
    h_ref = jax.nn.gelu(x @ w1 + b1, approximate=False)
    y_ref = h_ref @ w2 + b2

    # f32 path (exact match vs reference).
    out = jax.block_until_ready(gpt_mlp(x, w1, b1, w2, b2))
    assert out.shape == (B, S, H)
    assert jnp.allclose(out, y_ref, atol=1e-5, rtol=1e-5), "f32 mismatch vs reference"

    # bf16 MXU-operand path (production recommendation); looser tolerance.
    out_bf16 = jax.block_until_ready(gpt_mlp(x, w1, b1, w2, b2, mxu_dtype=jnp.bfloat16))
    assert out_bf16.shape == (B, S, H)
    assert jnp.allclose(out_bf16, y_ref, atol=1e-1, rtol=1e-1), "bf16 mismatch vs reference"

    print("KERNEL_OK")
</pallas_src>

<mosaic_0001>
module attributes {stable_mosaic.version = 11 : i64} {
  func.func @gpt_mlp_kernel(%arg0: i32, %arg1: i32, %arg2: memref<16x128xf32, #tpu.memory_space<vmem>>, %arg3: memref<128x128xf32, #tpu.memory_space<vmem>>, %arg4: memref<1x128xf32, #tpu.memory_space<vmem>>, %arg5: memref<128x128xf32, #tpu.memory_space<vmem>>, %arg6: memref<1x128xf32, #tpu.memory_space<vmem>>, %arg7: memref<16x128xf32, #tpu.memory_space<vmem>>) attributes {dimension_semantics = [#tpu.dimension_semantics<parallel>, #tpu.dimension_semantics<arbitrary>], iteration_bounds = array<i64: 1, 1>, scalar_prefetch = 0 : i64, scratch_operands = 0 : i64, tpu.core_type = #tpu.core_type<tc>, window_params = [{transform_indices = @transform_0, window_bounds = array<i64: 16, 128>}, {transform_indices = @transform_1, window_bounds = array<i64: 128, 128>}, {transform_indices = @transform_2, window_bounds = array<i64: 1, 128>}, {transform_indices = @transform_3, window_bounds = array<i64: 128, 128>}, {pipeline_mode = #tpu.pipeline_mode<synchronous>, transform_indices = @transform_4, window_bounds = array<i64: 1, 128>}, {transform_indices = @transform_5, window_bounds = array<i64: 16, 128>}]} {
    %c0_i32 = arith.constant 0 : i32
    %0 = arith.cmpi eq, %arg1, %c0_i32 : i32
    %1 = arith.extui %0 : i1 to i32
    %c0_i32_0 = arith.constant 0 : i32
    %2 = arith.cmpi ne, %1, %c0_i32_0 : i32
    scf.if %2 {
      %cst_18 = arith.constant 0.000000e+00 : f32
      %25 = vector.broadcast %cst_18 : f32 to vector<16x128xf32>
      %c0_19 = arith.constant 0 : index
      %c0_20 = arith.constant 0 : index
      %26 = vector.load %arg7[%c0_19, %c0_20] : memref<16x128xf32, #tpu.memory_space<vmem>>, vector<16x128xf32>
      tpu.vector_store %arg7[%c0_19, %c0_20], %25 {strides = array<i32>} : memref<16x128xf32, #tpu.memory_space<vmem>>, vector<16x128xf32>,
    } else {
    }
    %c0 = arith.constant 0 : index
    %c0_1 = arith.constant 0 : index
    %3 = vector.load %arg2[%c0, %c0_1] : memref<16x128xf32, #tpu.memory_space<vmem>>, vector<16x128xf32>
    %c0_2 = arith.constant 0 : index
    %c0_3 = arith.constant 0 : index
    %4 = vector.load %arg3[%c0_2, %c0_3] : memref<128x128xf32, #tpu.memory_space<vmem>>, vector<128x128xf32>
    %cst = arith.constant dense<0.000000e+00> : vector<16x128xf32>
    %5 = tpu.matmul %3, %4, %cst {dimension_numbers = #tpu.dot_dimension_numbers<[1], [0], [0], [1], [0, 0, 1, 1], [], []>} : vector<16x128xf32>, vector<128x128xf32>, vector<16x128xf32> -> vector<16x128xf32>
    %c0_4 = arith.constant 0 : index
    %c0_5 = arith.constant 0 : index
    %6 = vector.load %arg4[%c0_4, %c0_5] : memref<1x128xf32, #tpu.memory_space<vmem>>, vector<1x128xf32>
    %7 = vector.broadcast %6 : vector<1x128xf32> to vector<16x128xf32>
    %8 = arith.addf %5, %7 : vector<16x128xf32>
    %cst_6 = arith.constant 5.000000e-01 : f32
    %9 = vector.broadcast %cst_6 : f32 to vector<16x128xf32>
    %10 = arith.mulf %9, %8 : vector<16x128xf32>
    %cst_7 = arith.constant 0.707106769 : f32
    %11 = vector.broadcast %cst_7 : f32 to vector<16x128xf32>
    %12 = arith.mulf %8, %11 : vector<16x128xf32>
    %13 = math.erf %12 : vector<16x128xf32>
    %cst_8 = arith.constant 1.000000e+00 : f32
    %14 = vector.broadcast %cst_8 : f32 to vector<16x128xf32>
    %15 = arith.addf %14, %13 : vector<16x128xf32>
    %16 = arith.mulf %10, %15 : vector<16x128xf32>
    %c0_9 = arith.constant 0 : index
    %c0_10 = arith.constant 0 : index
    %17 = vector.load %arg7[%c0_9, %c0_10] : memref<16x128xf32, #tpu.memory_space<vmem>>, vector<16x128xf32>
    %c0_11 = arith.constant 0 : index
    %c0_12 = arith.constant 0 : index
    %18 = vector.load %arg5[%c0_11, %c0_12] : memref<128x128xf32, #tpu.memory_space<vmem>>, vector<128x128xf32>
    %cst_13 = arith.constant dense<0.000000e+00> : vector<16x128xf32>
    %19 = tpu.matmul %16, %18, %cst_13 {dimension_numbers = #tpu.dot_dimension_numbers<[1], [0], [0], [1], [0, 0, 1, 1], [], []>} : vector<16x128xf32>, vector<128x128xf32>, vector<16x128xf32> -> vector<16x128xf32>
    %20 = arith.addf %17, %19 : vector<16x128xf32>
    %c0_14 = arith.constant 0 : index
    %c0_15 = arith.constant 0 : index
    %21 = vector.load %arg7[%c0_14, %c0_15] : memref<16x128xf32, #tpu.memory_space<vmem>>, vector<16x128xf32>
    tpu.vector_store %arg7[%c0_14, %c0_15], %20 {strides = array<i32>} : memref<16x128xf32, #tpu.memory_space<vmem>>, vector<16x128xf32>,
    %c0_i32_16 = arith.constant 0 : i32
    %22 = arith.cmpi eq, %arg1, %c0_i32_16 : i32
    %23 = arith.extui %22 : i1 to i32
    %c0_i32_17 = arith.constant 0 : i32
    %24 = arith.cmpi ne, %23, %c0_i32_17 : i32
    scf.if %24 {
      %c0_18 = arith.constant 0 : index
      %c0_19 = arith.constant 0 : index
      %25 = vector.load %arg7[%c0_18, %c0_19] : memref<16x128xf32, #tpu.memory_space<vmem>>, vector<16x128xf32>
      %c0_20 = arith.constant 0 : index
      %c0_21 = arith.constant 0 : index
      %26 = vector.load %arg6[%c0_20, %c0_21] : memref<1x128xf32, #tpu.memory_space<vmem>>, vector<1x128xf32>
      %27 = vector.broadcast %26 : vector<1x128xf32> to vector<16x128xf32>
      %28 = arith.addf %25, %27 : vector<16x128xf32>
      %c0_22 = arith.constant 0 : index
      %c0_23 = arith.constant 0 : index
      %29 = vector.load %arg7[%c0_22, %c0_23] : memref<16x128xf32, #tpu.memory_space<vmem>>, vector<16x128xf32>
      tpu.vector_store %arg7[%c0_22, %c0_23], %28 {strides = array<i32>} : memref<16x128xf32, #tpu.memory_space<vmem>>, vector<16x128xf32>,
    } else {
    }
    return
  }
  func.func @transform_0(%arg0: i32, %arg1: i32) -> (i32, i32) {
    %c0_i32 = arith.constant 0 : i32
    %c0_i32_0 = arith.constant 0 : i32
    return %arg0, %c0_i32 : i32, i32
  }
  func.func @transform_1(%arg0: i32, %arg1: i32) -> (i32, i32) {
    %c0_i32 = arith.constant 0 : i32
    %c0_i32_0 = arith.constant 0 : i32
    return %c0_i32, %arg1 : i32, i32
  }
  func.func @transform_2(%arg0: i32, %arg1: i32) -> (i32, i32) {
    %c0_i32 = arith.constant 0 : i32
    %c0_i32_0 = arith.constant 0 : i32
    return %c0_i32, %arg1 : i32, i32
  }
  func.func @transform_3(%arg0: i32, %arg1: i32) -> (i32, i32) {
    %c0_i32 = arith.constant 0 : i32
    %c0_i32_0 = arith.constant 0 : i32
    return %arg1, %c0_i32 : i32, i32
  }
  func.func @transform_4(%arg0: i32, %arg1: i32) -> (i32, i32) {
    %c0_i32 = arith.constant 0 : i32
    %c0_i32_0 = arith.constant 0 : i32
    %c0_i32_1 = arith.constant 0 : i32
    return %c0_i32, %c0_i32_0 : i32, i32
  }
  func.func @transform_5(%arg0: i32, %arg1: i32) -> (i32, i32) {
    %c0_i32 = arith.constant 0 : i32
    %c0_i32_0 = arith.constant 0 : i32
    return %arg0, %c0_i32 : i32, i32
  }
}

</mosaic_0001>

<llo_original>
// kernel: _gpt_mlp_impl.1
$region0: #{_gpt_mlp_impl.1}
  #allocation0 [shape = 'u32[]', space=smem, size = 0x4, offset = 0x4, fixed_abs, tag = 'smem constant byte address 0x4 - core index']
  #allocation1 [shape = 'u32[72,128]{1,0:T(1,128)}', space=vmem, size = 0x9000, scoped, tag = 'internal scratch']
  %s0 = inlined_call_operand.vmem [shape: f32[16,128], index: 0, kind: input, shape index: {}]
  %s1 = inlined_call_operand.vmem [shape: f32[128,128], index: 1, kind: input, shape index: {}]
  %s2 = inlined_call_operand.vmem [shape: f32[1,128], index: 2, kind: input, shape index: {}]
  %s3 = inlined_call_operand.vmem [shape: f32[128,128], index: 3, kind: input, shape index: {}]
  %s4 = inlined_call_operand.vmem [shape: f32[1,128], index: 4, kind: input, shape index: {}]
  %s5 = inlined_call_operand.vmem [shape: f32[16,128], index: 5, kind: output, shape index: {}]
  %s6 = sld [smem:[#allocation0]]
  $region38: #{_gpt_mlp_impl.1} parent=0
    _
  %s8 = ssub.s32 1, %s6
  %s9 = scalar_select 0, %s8, %s6
  // Predicated region
  $region2: #{_gpt_mlp_impl.1} parent=0 // pred_check
    _
  $region3: #{_gpt_mlp_impl.1} parent=0 // pred_check_branch
    %11 = sbr.rel (0) target = $region5
  $region4: #{_gpt_mlp_impl.1} parent=0 // pred_region
    _
  $region5: #{_gpt_mlp_impl.1} parent=0 // pred_fallthru
    _
  // Predicated region
  $region6: #{_gpt_mlp_impl.1} parent=0 // pred_check
    _
  $region7: #{_gpt_mlp_impl.1} parent=0 // pred_check_branch
    %13 = sbr.rel (0) target = $region9
  $region8: #{_gpt_mlp_impl.1} parent=0 // pred_region
    _
  $region9: #{_gpt_mlp_impl.1} parent=0 // pred_fallthru
    _
  // Predicated region
  $region10: #{_gpt_mlp_impl.1} parent=0 // pred_check
    _
  $region11: #{_gpt_mlp_impl.1} parent=0 // pred_check_branch
    %15 = sbr.rel (0) target = $region13
  $region12: #{_gpt_mlp_impl.1} parent=0 // pred_region
    _
  $region13: #{_gpt_mlp_impl.1} parent=0 // pred_fallthru
    _
  // Predicated region
  $region14: #{_gpt_mlp_impl.1} parent=0 // pred_check
    _
  $region15: #{_gpt_mlp_impl.1} parent=0 // pred_check_branch
    %17 = sbr.rel (0) target = $region17
  $region16: #{_gpt_mlp_impl.1} parent=0 // pred_region
    _
  $region17: #{_gpt_mlp_impl.1} parent=0 // pred_fallthru
    _
  // Predicated region
  $region18: #{_gpt_mlp_impl.1} parent=0 // pred_check
    _
  $region19: #{_gpt_mlp_impl.1} parent=0 // pred_check_branch
    %19 = sbr.rel (0) target = $region21
  $region20: #{_gpt_mlp_impl.1} parent=0 // pred_region
    _
  $region21: #{_gpt_mlp_impl.1} parent=0 // pred_fallthru
    _
  %p20 = scmp.eq.s32.totalorder 0, 0
  // Predicated region
  $region22: #{_gpt_mlp_impl.1} parent=0 // pred_check
    %p21 = pneg %p20
  $region23: #{_gpt_mlp_impl.1} parent=0 // pred_check_branch
    %23 = sbr.rel (%p21) target = $region25
  $region24: #{_gpt_mlp_impl.1} parent=0 // pred_region
    %24 = vst [vmem:[%s5] sm:$0xff] 0.0
    %25 = vst [vmem:[%s5 + $0x8] sm:$0xff] 0.0
  $region25: #{_gpt_mlp_impl.1} parent=0 // pred_fallthru
    _
  %v26 = vld [vmem:[%s0] sm:$0xff]
  %v27 = vld [vmem:[%s0 + $0x8] sm:$0xff]
  %v28 = vld [vmem:[%s1] sm:$0xff]
  %v29 = vld [vmem:[%s1 + $0x8] sm:$0xff]
  %v30 = vld [vmem:[%s1 + $0x10] sm:$0xff]
  %v31 = vld [vmem:[%s1 + $0x18] sm:$0xff]
  %v32 = vld [vmem:[%s1 + $0x20] sm:$0xff]
  %v33 = vld [vmem:[%s1 + $0x28] sm:$0xff]
  %v34 = vld [vmem:[%s1 + $0x30] sm:$0xff]
  %v35 = vld [vmem:[%s1 + $0x38] sm:$0xff]
  %v36 = vld [vmem:[%s1 + $0x40] sm:$0xff]
  %v37 = vld [vmem:[%s1 + $0x48] sm:$0xff]
  %v38 = vld [vmem:[%s1 + $0x50] sm:$0xff]
  %v39 = vld [vmem:[%s1 + $0x58] sm:$0xff]
  %v40 = vld [vmem:[%s1 + $0x60] sm:$0xff]
  %v41 = vld [vmem:[%s1 + $0x68] sm:$0xff]
  %v42 = vld [vmem:[%s1 + $0x70] sm:$0xff]
  %v43 = vld [vmem:[%s1 + $0x78] sm:$0xff]
  %v44 = vld [vmem:[%s2] sm:$0x1]
  %v46 = vperm.slane %v44, 0
  %48 = vmatpush.msra.mxu0 %v43
  %49 = vmatpush.msra.mxu0 %v42
  %50 = vmatpush.msra.mxu0 %v41
  %51 = vmatpush.msra.mxu0 %v40
  %52 = vmatpush.msra.mxu0 %v39
  %53 = vmatpush.msra.mxu0 %v38
  %54 = vmatpush.msra.mxu0 %v37
  %55 = vmatpush.msra.mxu0 %v36
  %56 = vmatpush.msra.mxu0 %v35
  %57 = vmatpush.msra.mxu0 %v34
  %58 = vmatpush.msra.mxu0 %v33
  %59 = vmatpush.msra.mxu0 %v32
  %60 = vmatpush.msra.mxu0 %v31
  %61 = vmatpush.msra.mxu0 %v30
  %62 = vmatpush.msra.mxu0 %v29
  %63 = vmatpush.msra.mxu0 %v28
  %64 = vmatmul.f32.gmra.mxu0 %v26
  %v65 = vpop.f32.mrf.mxu0
  %v66 = vadd.f32 %v46, %v65
  %67 = vmatmul.f32.gmra.mxu0 %v27
  %v68 = vpop.f32.mrf.mxu0
  %v69 = vadd.f32 %v46, %v68
  %70 = vdwg.mxu0
  %v71 = vmul.f32 %v66, 0.5
  %v72 = vmul.f32 %v69, 0.5
  %v73 = vmul.f32 %v66, 0.70710677
  %v74 = vmul.f32 %v69, 0.70710677
  %v75 = vmul.f32 %v73, %v73
  %v76 = vmin.f32 16.0, %v75
  %v77 = vmul.f32 %v76, 2.1237322e-06
  %v78 = vadd.f32 %v77, 0.00028619796
  %v79 = vmul.f32 %v76, %v78
  %v80 = vadd.f32 %v79, 0.0036580483
  %v81 = vmul.f32 %v76, %v80
  %v82 = vadd.f32 %v81, 0.05243302
  %v83 = vmul.f32 %v76, %v82
  %v84 = vadd.f32 %v83, 0.18741608
  %v85 = vmul.f32 %v76, %v84
  %v86 = vadd.f32 %v85, 1.1283791
  %v87 = vmul.f32 %v73, %v86
  %v88 = vmul.f32 %v76, 3.8918573e-05
  %v89 = vadd.f32 %v88, 0.001143296
  %v90 = vmul.f32 %v76, %v89
  %v91 = vadd.f32 %v90, 0.014752088
  %v92 = vmul.f32 %v76, %v91
  %v93 = vadd.f32 %v92, 0.112945676
  %v94 = vmul.f32 %v76, %v93
  %v95 = vadd.f32 %v94, 0.4994258
  %v96 = vmul.f32 %v76, %v95
  %v97 = vadd.f32 %v96, 1.0
  %v98 = vrcp.pop %v97
  %v99 = vmul.f32 %v97, %v98
  %v100 = vsub.f32 1.0, %v99
  %v101 = vmul.f32 %v98, %v100
  %v102 = vadd.f32 %v98, %v101
  %vm103 = vweird.f32 %v97
  %vm104 = vweird.f32 %v98
  %vm105 = vmor %vm103, %vm104
  %v106 = vsel %vm105, %v98, %v102
  %v107 = vand.u32 2147483647, %v97
  %vm108 = vcmp.eq.f32.partialorder %v107, 8.507059e+37
  %v109 = vand.u32 %v97, 2147483648
  %v110 = vor.u32 1.1754944e-38, %v109
  %v111 = vsel %vm108, %v110, %v106
  %v112 = vmul.f32 %v87, %v111
  %v113 = vmin.f32 %v112, 1.0
  %v114 = vmax.f32 %v113, -1.0
  %v115 = vmul.f32 %v74, %v74
  %v116 = vmin.f32 16.0, %v115
  %v117 = vmul.f32 %v116, 2.1237322e-06
  %v118 = vadd.f32 %v117, 0.00028619796
  %v119 = vmul.f32 %v116, %v118
  %v120 = vadd.f32 %v119, 0.0036580483
  %v121 = vmul.f32 %v116, %v120
  %v122 = vadd.f32 %v121, 0.05243302
  %v123 = vmul.f32 %v116, %v122
  %v124 = vadd.f32 %v123, 0.18741608
  %v125 = vmul.f32 %v116, %v124
  %v126 = vadd.f32 %v125, 1.1283791
  %v127 = vmul.f32 %v74, %v126
  %v128 = vmul.f32 %v116, 3.8918573e-05
  %v129 = vadd.f32 %v128, 0.001143296
  %v130 = vmul.f32 %v116, %v129
  %v131 = vadd.f32 %v130, 0.014752088
  %v132 = vmul.f32 %v116, %v131
  %v133 = vadd.f32 %v132, 0.112945676
  %v134 = vmul.f32 %v116, %v133
  %v135 = vadd.f32 %v134, 0.4994258
  %v136 = vmul.f32 %v116, %v135
  %v137 = vadd.f32 %v136, 1.0
  %v138 = vrcp.pop %v137
  %v139 = vmul.f32 %v137, %v138
  %v140 = vsub.f32 1.0, %v139
  %v141 = vmul.f32 %v138, %v140
  %v142 = vadd.f32 %v138, %v141
  %vm143 = vweird.f32 %v137
  %vm144 = vweird.f32 %v138
  %vm145 = vmor %vm143, %vm144
  %v146 = vsel %vm145, %v138, %v142
  %v147 = vand.u32 2147483647, %v137
  %vm148 = vcmp.eq.f32.partialorder %v147, 8.507059e+37
  %v149 = vand.u32 %v137, 2147483648
  %v150 = vor.u32 1.1754944e-38, %v149
  %v151 = vsel %vm148, %v150, %v146
  %v152 = vmul.f32 %v127, %v151
  %v153 = vmin.f32 %v152, 1.0
  %v154 = vmax.f32 %v153, -1.0
  %v155 = vadd.f32 %v114, 1.0
  %v156 = vadd.f32 %v154, 1.0
  %v157 = vmul.f32 %v71, %v155
  %v158 = vmul.f32 %v72, %v156
  %v159 = vld [vmem:[%s5] sm:$0xff]
  %v160 = vld [vmem:[%s5 + $0x8] sm:$0xff]
  %v161 = vld [vmem:[%s3] sm:$0xff]
  %v162 = vld [vmem:[%s3 + $0x8] sm:$0xff]
  %v163 = vld [vmem:[%s3 + $0x10] sm:$0xff]
  %v164 = vld [vmem:[%s3 + $0x18] sm:$0xff]
  %v165 = vld [vmem:[%s3 + $0x20] sm:$0xff]
  %v166 = vld [vmem:[%s3 + $0x28] sm:$0xff]
  %v167 = vld [vmem:[%s3 + $0x30] sm:$0xff]
  %v168 = vld [vmem:[%s3 + $0x38] sm:$0xff]
  %v169 = vld [vmem:[%s3 + $0x40] sm:$0xff]
  %v170 = vld [vmem:[%s3 + $0x48] sm:$0xff]
  %v171 = vld [vmem:[%s3 + $0x50] sm:$0xff]
  %v172 = vld [vmem:[%s3 + $0x58] sm:$0xff]
  %v173 = vld [vmem:[%s3 + $0x60] sm:$0xff]
  %v174 = vld [vmem:[%s3 + $0x68] sm:$0xff]
  %v175 = vld [vmem:[%s3 + $0x70] sm:$0xff]
  %v176 = vld [vmem:[%s3 + $0x78] sm:$0xff]
  %177 = vmatpush.msra.mxu0 %v176
  %178 = vmatpush.msra.mxu0 %v175
  %179 = vmatpush.msra.mxu0 %v174
  %180 = vmatpush.msra.mxu0 %v173
  %181 = vmatpush.msra.mxu0 %v172
  %182 = vmatpush.msra.mxu0 %v171
  %183 = vmatpush.msra.mxu0 %v170
  %184 = vmatpush.msra.mxu0 %v169
  %185 = vmatpush.msra.mxu0 %v168
  %186 = vmatpush.msra.mxu0 %v167
  %187 = vmatpush.msra.mxu0 %v166
  %188 = vmatpush.msra.mxu0 %v165
  %189 = vmatpush.msra.mxu0 %v164
  %190 = vmatpush.msra.mxu0 %v163
  %191 = vmatpush.msra.mxu0 %v162
  %192 = vmatpush.msra.mxu0 %v161
  %193 = vmatmul.f32.gmra.mxu0 %v157
  %v194 = vpop.f32.mrf.mxu0
  %v195 = vadd.f32 0.0, %v194
  %196 = vmatmul.f32.gmra.mxu0 %v158
  %v197 = vpop.f32.mrf.mxu0
  %v198 = vadd.f32 0.0, %v197
  %199 = vdwg.mxu0
  %v200 = vadd.f32 %v159, %v195
  %v201 = vadd.f32 %v160, %v198
  %202 = vst [vmem:[%s5] sm:$0xff] %v200
  %203 = vst [vmem:[%s5 + $0x8] sm:$0xff] %v201
  // Predicated region
  $region26: #{_gpt_mlp_impl.1} parent=0 // pred_check
    %p204 = pneg %p20
  $region27: #{_gpt_mlp_impl.1} parent=0 // pred_check_branch
    %206 = sbr.rel (%p204) target = $region29
  $region28: #{_gpt_mlp_impl.1} parent=0 // pred_region
    %v207 = vld [vmem:[%s5] sm:$0xff]
    %v208 = vld [vmem:[%s5 + $0x8] sm:$0xff]
    %v209 = vld [vmem:[%s4] sm:$0x1]
    %v211 = vperm.slane %v209, 0
    %v213 = vadd.f32 %v207, %v211
    %v214 = vadd.f32 %v208, %v211
    %215 = vst [vmem:[%s5] sm:$0xff] %v213
    %216 = vst [vmem:[%s5 + $0x8] sm:$0xff] %v214
  $region29: #{_gpt_mlp_impl.1} parent=0 // pred_fallthru
    _
  // Predicated region
  $region30: #{_gpt_mlp_impl.1} parent=0 // pred_check
    _
  $region31: #{_gpt_mlp_impl.1} parent=0 // pred_check_branch
    %218 = sbr.rel (0) target = $region33
  $region32: #{_gpt_mlp_impl.1} parent=0 // pred_region
    _
  $region33: #{_gpt_mlp_impl.1} parent=0 // pred_fallthru
    _
  // Predicated region
  $region34: #{_gpt_mlp_impl.1} parent=0 // pred_check
    _
  $region35: #{_gpt_mlp_impl.1} parent=0 // pred_check_branch
    %220 = sbr.rel (0) target = $region37
  $region36: #{_gpt_mlp_impl.1} parent=0 // pred_region
    _
  $region37: #{_gpt_mlp_impl.1} parent=0 // pred_fallthru
    _

</llo_original>
